<compile_context>
chip_gen: v7x
topology: tpu7x:2x2x1
jax: 0.10.0
libtpu: 0.0.40
codegen_flags: <defaults>
</compile_context>

<pallas_src>
import math

import jax
import jax.numpy as jnp
from jax.experimental import pallas as pl
from jax.experimental.pallas import tpu as pltpu

_OUT_W = 8          # lane-padded output width: [logprob, value, entropy, pad...]
_LOG2PI = math.log(2.0 * math.pi)


def _round_up(n, m):
    return ((n + m - 1) // m) * m


def _actor_critic_kernel(
    state_ref, action_ref, inv_var_ref, consts_ref,
    w1_ref, b1_ref, w2_ref, b2_ref, w3_ref, b3_ref,
    out_ref,
):
    x = state_ref[...]                          # (TB, S)  bf16
    a = action_ref[...]                         # (TB, A)  f32
    inv_var = inv_var_ref[...]                  # (1, A)   f32 (precomputed 1/var)
    adim = a.shape[-1]

    # -------- fused actor+critic MLP (bf16 MXU operands, f32 accumulation) --------
    h = jnp.dot(x, w1_ref[...],
                preferred_element_type=jnp.float32) + b1_ref[...]        # (TB, 256)
    h = jnp.maximum(h, 0.0)                                              # ReLU
    h = jnp.dot(h.astype(jnp.bfloat16), w2_ref[...],
                preferred_element_type=jnp.float32) + b2_ref[...]        # (TB, 128)
    h = jnp.maximum(h, 0.0)                                              # ReLU
    o3 = jnp.dot(h.astype(jnp.bfloat16), w3_ref[...],
                 preferred_element_type=jnp.float32) + b3_ref[...]       # (TB, A+1)

    action_mean = jnp.tanh(o3[:, :adim])                                 # (TB, A)
    value = o3[:, adim:adim + 1]                                         # (TB, 1)

    # ---- MultivariateNormal(mean, diag(var)) log_prob (constants hoisted) ----
    diff = a - action_mean
    quad = jnp.sum(diff * diff * inv_var, axis=-1, keepdims=True)        # (TB, 1)
    logprob = consts_ref[0:1, 0:1] - 0.5 * quad                          # (TB, 1)
    entropy = consts_ref[0:1, 1:2]                                       # (1, 1) scalar

    # ---- single lane-padded output slab: [logprob, value, entropy, pad...] ----
    lane = jax.lax.broadcasted_iota(jnp.int32, out_ref.shape, 1)
    out_ref[...] = jnp.where(lane == 0, logprob,
                             jnp.where(lane == 1, value, entropy))


def actor_critic_evaluate(state, action, action_var, params, *, tile_b=1024):
    """ActorCritic.evaluate(state, action) — continuous branch.

    Returns (action_logprobs (B,), state_values (B,1), dist_entropy (B,)).
    """
    f32 = jnp.float32
    B, S = state.shape
    A = action.shape[-1]

    # ---- pack actor/critic weights into fused matmuls (bf16 for the MXU) ----
    w1 = jnp.concatenate([params["aw1"], params["cw1"]], axis=1).astype(jnp.bfloat16)  # (S, 256)
    b1 = jnp.concatenate([params["ab1"], params["cb1"]], axis=1).astype(f32)           # (1, 256)

    z2 = jnp.zeros((128, 64), f32)
    w2 = jnp.concatenate(
        [jnp.concatenate([params["aw2"], z2], axis=1),
         jnp.concatenate([z2, params["cw2"]], axis=1)], axis=0).astype(jnp.bfloat16)   # (256, 128)
    b2 = jnp.concatenate([params["ab2"], params["cb2"]], axis=1).astype(f32)           # (1, 128)

    w3 = jnp.concatenate(
        [jnp.concatenate([params["aw3"], jnp.zeros((64, 1), f32)], axis=1),
         jnp.concatenate([jnp.zeros((64, A), f32), params["cw3"]], axis=1)],
        axis=0).astype(jnp.bfloat16)                                                   # (128, A+1)
    b3 = jnp.concatenate([params["ab3"], params["cb3"]], axis=1).astype(f32)           # (1, A+1)

    # ---- batch-invariant distribution constants (hoisted out of the kernel) ----
    var = action_var.astype(f32)
    inv_var = (1.0 / var).reshape(1, A)
    logdet = jnp.sum(jnp.log(var))
    logprob_const = -0.5 * (A * _LOG2PI) - 0.5 * logdet
    entropy_const = 0.5 * A * (1.0 + _LOG2PI) + 0.5 * logdet
    consts = jnp.stack([logprob_const, entropy_const]).reshape(1, 2).astype(f32)

    # ---- bf16 state stream (kernel already runs the matmul on bf16 operands) ----
    state = state.astype(jnp.bfloat16)
    action = action.astype(f32)

    # ---- batch tiling (pad B up to a multiple of the tile) ----
    TB = min(tile_b, _round_up(B, 8))
    Bp = _round_up(B, TB)
    if Bp != B:
        pad = Bp - B
        state = jnp.pad(state, ((0, pad), (0, 0)))
        action = jnp.pad(action, ((0, pad), (0, 0)))
    grid = (pl.cdiv(Bp, TB),)

    def _tiled(dim):
        return pl.BlockSpec((TB, dim), lambda i: (i, 0))

    def _resident(shape):
        return pl.BlockSpec(shape, lambda i: (0, 0))

    out = pl.pallas_call(
        _actor_critic_kernel,
        out_shape=jax.ShapeDtypeStruct((Bp, _OUT_W), f32),
        grid=grid,
        in_specs=[
            _tiled(S),                      # state (bf16)
            _tiled(A),                      # action (f32)
            _resident((1, A)),              # inv_var
            _resident((1, 2)),              # [logprob_const, entropy]
            _resident((S, 256)), _resident((1, 256)),        # fused layer 1
            _resident((256, 128)), _resident((1, 128)),      # fused layer 2 (block-diag)
            _resident((128, A + 1)), _resident((1, A + 1)),  # fused layer 3 (block-diag)
        ],
        out_specs=pl.BlockSpec((TB, _OUT_W), lambda i: (i, 0)),
        compiler_params=pltpu.CompilerParams(dimension_semantics=("parallel",)),
    )(state, action, inv_var, consts, w1, b1, w2, b2, w3, b3)

    logprobs = out[:B, 0]
    values = out[:B, 1:2]
    entropy = out[:B, 2]
    return logprobs, values, entropy


def init_params(key, state_dim, action_dim):
    """Matches PyTorch nn.Linear default init: U(-1/sqrt(fan_in), 1/sqrt(fan_in))."""
    dims_actor = [(state_dim, 128), (128, 64), (64, action_dim)]
    dims_critic = [(state_dim, 128), (128, 64), (64, 1)]
    params = {}
    keys = jax.random.split(key, 12)
    k = 0
    for prefix, dims in (("a", dims_actor), ("c", dims_critic)):
        for i, (fan_in, fan_out) in enumerate(dims, start=1):
            bound = 1.0 / math.sqrt(fan_in)
            params[f"{prefix}w{i}"] = jax.random.uniform(
                keys[k], (fan_in, fan_out), jnp.float32, -bound, bound)
            k += 1
            params[f"{prefix}b{i}"] = jax.random.uniform(
                keys[k], (1, fan_out), jnp.float32, -bound, bound)
            k += 1
    return params


if __name__ == "__main__":
    # Small, module-consistent shapes.
    state_dim = 8
    action_dim = 4
    batch = 8
    action_std_init = 0.6
    # TODO(synk): discrete (Categorical/Softmax) branch and act()'s dist.sample()
    #             (stochastic sampling) are not reproduced; continuous evaluate() is.

    key = jax.random.PRNGKey(0)
    k_params, k_state, k_action = jax.random.split(key, 3)

    params = init_params(k_params, state_dim, action_dim)
    action_var = jnp.full((action_dim,), action_std_init * action_std_init, jnp.float32)

    state = jax.random.normal(k_state, (batch, state_dim), jnp.float32)
    action = jax.random.normal(k_action, (batch, action_dim), jnp.float32)

    logprobs, values, entropy = actor_critic_evaluate(state, action, action_var, params)
    jax.block_until_ready((logprobs, values, entropy))

    # Pure-JAX reference using the same bf16-operand / f32-accumulation matmul numerics.
    def bdot(x, w):
        return jnp.dot(x.astype(jnp.bfloat16), w.astype(jnp.bfloat16),
                       preferred_element_type=jnp.float32)

    h = jax.nn.relu(bdot(state, params["aw1"]) + params["ab1"])
    h = jax.nn.relu(bdot(h, params["aw2"]) + params["ab2"])
    mean_ref = jnp.tanh(bdot(h, params["aw3"]) + params["ab3"])

    v = jax.nn.relu(bdot(state, params["cw1"]) + params["cb1"])
    v = jax.nn.relu(bdot(v, params["cw2"]) + params["cb2"])
    val_ref = bdot(v, params["cw3"]) + params["cb3"]

    var = action_var[None, :]
    lp_ref = -0.5 * (jnp.sum((action - mean_ref) ** 2 / var, axis=-1)
                     + action_dim * _LOG2PI + jnp.sum(jnp.log(var)))
    ent_ref = 0.5 * action_dim * (1.0 + _LOG2PI) + 0.5 * jnp.sum(jnp.log(action_var))

    assert jnp.allclose(logprobs, lp_ref, atol=2e-3, rtol=2e-3), (logprobs, lp_ref)
    assert jnp.allclose(values, val_ref, atol=2e-3, rtol=2e-3), (values, val_ref)
    assert jnp.allclose(entropy, jnp.full((batch,), ent_ref), atol=1e-5), (entropy, ent_ref)

    print("KERNEL_OK")
</pallas_src>

<mosaic_0001>
module attributes {stable_mosaic.version = 11 : i64} {
  func.func @_actor_critic_kernel(%arg0: i32, %arg1: memref<8x8xbf16, #tpu.memory_space<vmem>>, %arg2: memref<8x4xf32, #tpu.memory_space<vmem>>, %arg3: memref<1x4xf32, #tpu.memory_space<vmem>>, %arg4: memref<1x2xf32, #tpu.memory_space<vmem>>, %arg5: memref<8x256xbf16, #tpu.memory_space<vmem>>, %arg6: memref<1x256xf32, #tpu.memory_space<vmem>>, %arg7: memref<256x128xbf16, #tpu.memory_space<vmem>>, %arg8: memref<1x128xf32, #tpu.memory_space<vmem>>, %arg9: memref<128x5xbf16, #tpu.memory_space<vmem>>, %arg10: memref<1x5xf32, #tpu.memory_space<vmem>>, %arg11: memref<8x8xf32, #tpu.memory_space<vmem>>) attributes {dimension_semantics = [#tpu.dimension_semantics<parallel>], iteration_bounds = array<i64: 1>, scalar_prefetch = 0 : i64, scratch_operands = 0 : i64, tpu.core_type = #tpu.core_type<tc>, window_params = [{transform_indices = @transform_0, window_bounds = array<i64: 8, 8>}, {transform_indices = @transform_1, window_bounds = array<i64: 8, 4>}, {pipeline_mode = #tpu.pipeline_mode<synchronous>, transform_indices = @transform_2, window_bounds = array<i64: 1, 4>}, {pipeline_mode = #tpu.pipeline_mode<synchronous>, transform_indices = @transform_3, window_bounds = array<i64: 1, 2>}, {pipeline_mode = #tpu.pipeline_mode<synchronous>, transform_indices = @transform_4, window_bounds = array<i64: 8, 256>}, {pipeline_mode = #tpu.pipeline_mode<synchronous>, transform_indices = @transform_5, window_bounds = array<i64: 1, 256>}, {pipeline_mode = #tpu.pipeline_mode<synchronous>, transform_indices = @transform_6, window_bounds = array<i64: 256, 128>}, {pipeline_mode = #tpu.pipeline_mode<synchronous>, transform_indices = @transform_7, window_bounds = array<i64: 1, 128>}, {pipeline_mode = #tpu.pipeline_mode<synchronous>, transform_indices = @transform_8, window_bounds = array<i64: 128, 5>}, {pipeline_mode = #tpu.pipeline_mode<synchronous>, transform_indices = @transform_9, window_bounds = array<i64: 1, 5>}, {transform_indices = @transform_10, window_bounds = array<i64: 8, 8>}]} {
    %c0 = arith.constant 0 : index
    %c0_0 = arith.constant 0 : index
    %0 = vector.load %arg1[%c0, %c0_0] : memref<8x8xbf16, #tpu.memory_space<vmem>>, vector<8x8xbf16>
    %c0_1 = arith.constant 0 : index
    %c0_2 = arith.constant 0 : index
    %1 = vector.load %arg2[%c0_1, %c0_2] : memref<8x4xf32, #tpu.memory_space<vmem>>, vector<8x4xf32>
    %c0_3 = arith.constant 0 : index
    %c0_4 = arith.constant 0 : index
    %2 = vector.load %arg3[%c0_3, %c0_4] : memref<1x4xf32, #tpu.memory_space<vmem>>, vector<1x4xf32>
    %c0_5 = arith.constant 0 : index
    %c0_6 = arith.constant 0 : index
    %3 = vector.load %arg5[%c0_5, %c0_6] : memref<8x256xbf16, #tpu.memory_space<vmem>>, vector<8x256xbf16>
    %cst = arith.constant dense<0.000000e+00> : vector<8x256xf32>
    %4 = tpu.matmul %0, %3, %cst {dimension_numbers = #tpu.dot_dimension_numbers<[1], [0], [0], [1], [0, 0, 1, 1], [], []>} : vector<8x8xbf16>, vector<8x256xbf16>, vector<8x256xf32> -> vector<8x256xf32>
    %c0_7 = arith.constant 0 : index
    %c0_8 = arith.constant 0 : index
    %5 = vector.load %arg6[%c0_7, %c0_8] : memref<1x256xf32, #tpu.memory_space<vmem>>, vector<1x256xf32>
    %6 = vector.broadcast %5 : vector<1x256xf32> to vector<8x256xf32>
    %7 = arith.addf %4, %6 : vector<8x256xf32>
    %cst_9 = arith.constant 0.000000e+00 : f32
    %8 = vector.broadcast %cst_9 : f32 to vector<8x256xf32>
    %9 = arith.maximumf %7, %8 : vector<8x256xf32>
    %10 = arith.truncf %9 : vector<8x256xf32> to vector<8x256xbf16>
    %c0_10 = arith.constant 0 : index
    %c0_11 = arith.constant 0 : index
    %11 = vector.load %arg7[%c0_10, %c0_11] : memref<256x128xbf16, #tpu.memory_space<vmem>>, vector<256x128xbf16>
    %cst_12 = arith.constant dense<0.000000e+00> : vector<8x128xf32>
    %12 = tpu.matmul %10, %11, %cst_12 {dimension_numbers = #tpu.dot_dimension_numbers<[1], [0], [0], [1], [0, 0, 1, 1], [], []>} : vector<8x256xbf16>, vector<256x128xbf16>, vector<8x128xf32> -> vector<8x128xf32>
    %c0_13 = arith.constant 0 : index
    %c0_14 = arith.constant 0 : index
    %13 = vector.load %arg8[%c0_13, %c0_14] : memref<1x128xf32, #tpu.memory_space<vmem>>, vector<1x128xf32>
    %14 = vector.broadcast %13 : vector<1x128xf32> to vector<8x128xf32>
    %15 = arith.addf %12, %14 : vector<8x128xf32>
    %cst_15 = arith.constant 0.000000e+00 : f32
    %16 = vector.broadcast %cst_15 : f32 to vector<8x128xf32>
    %17 = arith.maximumf %15, %16 : vector<8x128xf32>
    %18 = arith.truncf %17 : vector<8x128xf32> to vector<8x128xbf16>
    %c0_16 = arith.constant 0 : index
    %c0_17 = arith.constant 0 : index
    %19 = vector.load %arg9[%c0_16, %c0_17] : memref<128x5xbf16, #tpu.memory_space<vmem>>, vector<128x5xbf16>
    %cst_18 = arith.constant dense<0.000000e+00> : vector<8x5xf32>
    %20 = tpu.matmul %18, %19, %cst_18 {dimension_numbers = #tpu.dot_dimension_numbers<[1], [0], [0], [1], [0, 0, 1, 1], [], []>} : vector<8x128xbf16>, vector<128x5xbf16>, vector<8x5xf32> -> vector<8x5xf32>
    %c0_19 = arith.constant 0 : index
    %c0_20 = arith.constant 0 : index
    %21 = vector.load %arg10[%c0_19, %c0_20] : memref<1x5xf32, #tpu.memory_space<vmem>>, vector<1x5xf32>
    %22 = vector.broadcast %21 : vector<1x5xf32> to vector<8x5xf32>
    %23 = arith.addf %20, %22 : vector<8x5xf32>
    %24 = vector.extract_strided_slice %23 {offsets = [0, 0], sizes = [8, 4], strides = [1, 1]} : vector<8x5xf32> to vector<8x4xf32>
    %25 = math.tanh %24 : vector<8x4xf32>
    %26 = vector.extract_strided_slice %23 {offsets = [0, 4], sizes = [8, 1], strides = [1, 1]} : vector<8x5xf32> to vector<8x1xf32>
    %27 = arith.subf %1, %25 : vector<8x4xf32>
    %28 = arith.mulf %27, %27 : vector<8x4xf32>
    %29 = vector.broadcast %2 : vector<1x4xf32> to vector<8x4xf32>
    %30 = arith.mulf %28, %29 : vector<8x4xf32>
    %cst_21 = arith.constant dense<0.000000e+00> : vector<8xf32>
    %31 = vector.multi_reduction <add>, %30, %cst_21 [1] : vector<8x4xf32> to vector<8xf32>
    %32 = vector.shape_cast %31 : vector<8xf32> to vector<8x1xf32>
    %c0_22 = arith.constant 0 : index
    %c0_23 = arith.constant 0 : index
    %33 = vector.load %arg4[%c0_22, %c0_23] : memref<1x2xf32, #tpu.memory_space<vmem>>, vector<1x1xf32>
    %cst_24 = arith.constant 5.000000e-01 : f32
    %34 = vector.broadcast %cst_24 : f32 to vector<8x1xf32>
    %35 = arith.mulf %34, %32 : vector<8x1xf32>
    %36 = vector.broadcast %33 : vector<1x1xf32> to vector<8x1xf32>
    %37 = arith.subf %36, %35 : vector<8x1xf32>
    %c0_25 = arith.constant 0 : index
    %c1 = arith.constant 1 : index
    %38 = vector.load %arg4[%c0_25, %c1] : memref<1x2xf32, #tpu.memory_space<vmem>>, vector<1x1xf32>
    %39 = tpu.iota {dimensions = array<i32: 1>} : vector<8x8xi32>
    %c0_i32 = arith.constant 0 : i32
    %40 = vector.broadcast %c0_i32 : i32 to vector<8x8xi32>
    %41 = arith.cmpi eq, %39, %40 : vector<8x8xi32>
    %c1_i32 = arith.constant 1 : i32
    %42 = vector.broadcast %c1_i32 : i32 to vector<8x8xi32>
    %43 = arith.cmpi eq, %39, %42 : vector<8x8xi32>
    %44 = vector.shape_cast %26 : vector<8x1xf32> to vector<8x1xf32>
    %45 = vector.broadcast %44 : vector<8x1xf32> to vector<8x8xf32>
    %46 = vector.shape_cast %38 : vector<1x1xf32> to vector<1x1xf32>
    %47 = vector.broadcast %46 : vector<1x1xf32> to vector<8x8xf32>
    %48 = arith.select %43, %45, %47 : vector<8x8xi1>, vector<8x8xf32>
    %49 = vector.shape_cast %37 : vector<8x1xf32> to vector<8x1xf32>
    %50 = vector.broadcast %49 : vector<8x1xf32> to vector<8x8xf32>
    %51 = arith.select %41, %50, %48 : vector<8x8xi1>, vector<8x8xf32>
    %c0_26 = arith.constant 0 : index
    %c0_27 = arith.constant 0 : index
    %52 = vector.load %arg11[%c0_26, %c0_27] : memref<8x8xf32, #tpu.memory_space<vmem>>, vector<8x8xf32>
    tpu.vector_store %arg11[%c0_26, %c0_27], %51 {strides = array<i32>} : memref<8x8xf32, #tpu.memory_space<vmem>>, vector<8x8xf32>,
    return
  }
  func.func @transform_0(%arg0: i32) -> (i32, i32) {
    %c0_i32 = arith.constant 0 : i32
    %c0_i32_0 = arith.constant 0 : i32
    return %arg0, %c0_i32 : i32, i32
  }
  func.func @transform_1(%arg0: i32) -> (i32, i32) {
    %c0_i32 = arith.constant 0 : i32
    %c0_i32_0 = arith.constant 0 : i32
    return %arg0, %c0_i32 : i32, i32
  }
  func.func @transform_2(%arg0: i32) -> (i32, i32) {
    %c0_i32 = arith.constant 0 : i32
    %c0_i32_0 = arith.constant 0 : i32
    %c0_i32_1 = arith.constant 0 : i32
    return %c0_i32, %c0_i32_0 : i32, i32
  }
  func.func @transform_3(%arg0: i32) -> (i32, i32) {
    %c0_i32 = arith.constant 0 : i32
    %c0_i32_0 = arith.constant 0 : i32
    %c0_i32_1 = arith.constant 0 : i32
    return %c0_i32, %c0_i32_0 : i32, i32
  }
  func.func @transform_4(%arg0: i32) -> (i32, i32) {
    %c0_i32 = arith.constant 0 : i32
    %c0_i32_0 = arith.constant 0 : i32
    %c0_i32_1 = arith.constant 0 : i32
    return %c0_i32, %c0_i32_0 : i32, i32
  }
  func.func @transform_5(%arg0: i32) -> (i32, i32) {
    %c0_i32 = arith.constant 0 : i32
    %c0_i32_0 = arith.constant 0 : i32
    %c0_i32_1 = arith.constant 0 : i32
    return %c0_i32, %c0_i32_0 : i32, i32
  }
  func.func @transform_6(%arg0: i32) -> (i32, i32) {
    %c0_i32 = arith.constant 0 : i32
    %c0_i32_0 = arith.constant 0 : i32
    %c0_i32_1 = arith.constant 0 : i32
    return %c0_i32, %c0_i32_0 : i32, i32
  }
  func.func @transform_7(%arg0: i32) -> (i32, i32) {
    %c0_i32 = arith.constant 0 : i32
    %c0_i32_0 = arith.constant 0 : i32
    %c0_i32_1 = arith.constant 0 : i32
    return %c0_i32, %c0_i32_0 : i32, i32
  }
  func.func @transform_8(%arg0: i32) -> (i32, i32) {
    %c0_i32 = arith.constant 0 : i32
    %c0_i32_0 = arith.constant 0 : i32
    %c0_i32_1 = arith.constant 0 : i32
    return %c0_i32, %c0_i32_0 : i32, i32
  }
  func.func @transform_9(%arg0: i32) -> (i32, i32) {
    %c0_i32 = arith.constant 0 : i32
    %c0_i32_0 = arith.constant 0 : i32
    %c0_i32_1 = arith.constant 0 : i32
    return %c0_i32, %c0_i32_0 : i32, i32
  }
  func.func @transform_10(%arg0: i32) -> (i32, i32) {
    %c0_i32 = arith.constant 0 : i32
    %c0_i32_0 = arith.constant 0 : i32
    return %arg0, %c0_i32 : i32, i32
  }
}

</mosaic_0001>

<llo_original>
// kernel: tpu_custom_call.1
$region0: #{tpu_custom_call.1}
  #allocation0 [shape = 'u32[]', space=smem, size = 0x4, offset = 0x4, fixed_abs, tag = 'smem constant byte address 0x4 - core index']
  #allocation1 [shape = 'u32[144,128]{1,0:T(1,128)}', space=vmem, size = 0x12000, scoped, tag = 'internal scratch']
  %s0 = inlined_call_operand.vmem [shape: bf16[8,8], index: 0, kind: input, shape index: {}]
  %s1 = inlined_call_operand.vmem [shape: f32[8,4], index: 1, kind: input, shape index: {}]
  %s2 = inlined_call_operand.vmem [shape: f32[1,4], index: 2, kind: input, shape index: {}]
  %s3 = inlined_call_operand.vmem [shape: f32[1,2], index: 3, kind: input, shape index: {}]
  %s4 = inlined_call_operand.vmem [shape: bf16[8,256], index: 4, kind: input, shape index: {}]
  %s5 = inlined_call_operand.vmem [shape: f32[1,256], index: 5, kind: input, shape index: {}]
  %s6 = inlined_call_operand.hbm [shape: bf16[256,128], index: 6, kind: input, shape index: {}]
  %s7 = inlined_call_operand.vmem [shape: f32[1,128], index: 7, kind: input, shape index: {}]
  %s8 = inlined_call_operand.vmem [shape: bf16[128,5], index: 8, kind: input, shape index: {}]
  %s9 = inlined_call_operand.vmem [shape: f32[1,5], index: 9, kind: input, shape index: {}]
  %s10 = inlined_call_operand.hbm [shape: f32[8,8], index: 10, kind: output, shape index: {}]
  %s11 = sld [smem:[#allocation0]]
  $region54: #{tpu_custom_call.1} parent=0
    _
  %s13 = ssub.s32 1, %s11
  %s14 = scalar_select 0, %s13, %s11
  $region1: #{tpu_custom_call.1} parent=0
    #allocation2 [shape = 'u8[65536]{0}', space=vmem, size = 0x10000, scoped, tag = 'input window, operand 6, single buffered']
    #allocation3 [shape = 's32[1]{0}', space=sflag, size = 0x4, scoped, tag = 'scoped memory for tpu_custom_call.1']
    #allocation4 [shape = 's32[1]{0}', space=sflag, size = 0x4, scoped, tag = 'scoped memory for tpu_custom_call.1']
    #allocation5 [shape = 'u8[4096]{0}', space=vmem, size = 0x1000, scoped, tag = 'output window, operand 0, single buffered']
    %15 = vsyncpa [#allocation3], 0
    %16 = vsyncpa [#allocation4], 0
    // Predicated region
    $region2: #{tpu_custom_call.1} parent=1 // pred_check
      _
    $region3: #{tpu_custom_call.1} parent=1 // pred_check_branch
      %18 = sbr.rel (0) target = $region5
    $region4: #{tpu_custom_call.1} parent=1 // pred_region
      _
    $region5: #{tpu_custom_call.1} parent=1 // pred_fallthru
      _
    // Predicated region
    $region6: #{tpu_custom_call.1} parent=1 // pred_check
      _
    $region7: #{tpu_custom_call.1} parent=1 // pred_check_branch
      %20 = sbr.rel (0) target = $region9
    $region8: #{tpu_custom_call.1} parent=1 // pred_region
      _
    $region9: #{tpu_custom_call.1} parent=1 // pred_fallthru
      _
    // Predicated region
    $region10: #{tpu_custom_call.1} parent=1 // pred_check
      _
    $region11: #{tpu_custom_call.1} parent=1 // pred_check_branch
      %22 = sbr.rel (0) target = $region13
    $region12: #{tpu_custom_call.1} parent=1 // pred_region
      _
    $region13: #{tpu_custom_call.1} parent=1 // pred_fallthru
      _
    // Predicated region
    $region14: #{tpu_custom_call.1} parent=1 // pred_check
      _
    $region15: #{tpu_custom_call.1} parent=1 // pred_check_branch
      %24 = sbr.rel (0) target = $region17
    $region16: #{tpu_custom_call.1} parent=1 // pred_region
      _
    $region17: #{tpu_custom_call.1} parent=1 // pred_fallthru
      _
    // Predicated region
    $region18: #{tpu_custom_call.1} parent=1 // pred_check
      _
    $region19: #{tpu_custom_call.1} parent=1 // pred_check_branch
      %26 = sbr.rel (0) target = $region21
    $region20: #{tpu_custom_call.1} parent=1 // pred_region
      _
    $region21: #{tpu_custom_call.1} parent=1 // pred_fallthru
      _
    // Predicated region
    $region22: #{tpu_custom_call.1} parent=1 // pred_check
      _
    $region23: #{tpu_custom_call.1} parent=1 // pred_check_branch
      %28 = sbr.rel (0) target = $region25
    $region24: #{tpu_custom_call.1} parent=1 // pred_region
      _
    $region25: #{tpu_custom_call.1} parent=1 // pred_fallthru
      _
    // Predicated region
    $region26: #{tpu_custom_call.1} parent=1 // pred_check
      _
    $region27: #{tpu_custom_call.1} parent=1 // pred_check_branch
      %30 = sbr.rel (0) target = $region29
    $region28: #{tpu_custom_call.1} parent=1 // pred_region
      %s32 = ssub.s32 2048, 2048
      %33 = vsyncadd [#allocation3], %s32
      %s34 = sshll.u32 [#allocation2], 4
      %s35 = int_to_ptr.vmem [resolvable:$true] %s34
      %40 = dma.hbm_to_vmem [thread:$0]  %s6, 2048, %s35, [#allocation3], 64, 64, 4
    $region29: #{tpu_custom_call.1} parent=1 // pred_fallthru
      _
    // Predicated region
    $region30: #{tpu_custom_call.1} parent=1 // pred_check
      _
    $region31: #{tpu_custom_call.1} parent=1 // pred_check_branch
      %42 = sbr.rel (0) target = $region33
    $region32: #{tpu_custom_call.1} parent=1 // pred_region
      _
    $region33: #{tpu_custom_call.1} parent=1 // pred_fallthru
      _
    // Predicated region
    $region34: #{tpu_custom_call.1} parent=1 // pred_check
      _
    $region35: #{tpu_custom_call.1} parent=1 // pred_check_branch
      %44 = sbr.rel (0) target = $region37
    $region36: #{tpu_custom_call.1} parent=1 // pred_region
      _
    $region37: #{tpu_custom_call.1} parent=1 // pred_fallthru
      _
    // Predicated region
    $region38: #{tpu_custom_call.1} parent=1 // pred_check
      _
    $region39: #{tpu_custom_call.1} parent=1 // pred_check_branch
      %46 = sbr.rel (0) target = $region41
    $region40: #{tpu_custom_call.1} parent=1 // pred_region
      _
    $region41: #{tpu_custom_call.1} parent=1 // pred_fallthru
      _
    // Predicated region
    $region42: #{tpu_custom_call.1} parent=1 // pred_check
      _
    $region43: #{tpu_custom_call.1} parent=1 // pred_check_branch
      %48 = sbr.rel (0) target = $region45
    $region44: #{tpu_custom_call.1} parent=1 // pred_region
      %49 = dma.done [#allocation3], 2048
    $region45: #{tpu_custom_call.1} parent=1 // pred_fallthru
      _
    %v51 = vld [vmem:[%s0] sm:$0xf]
    %v52 = vld [vmem:[%s1] sm:$0xff]
    %v53 = vld [vmem:[%s2] sm:$0x1]
    %v54 = vld [vmem:[%s4] sm:$0xff]
    %v55 = vld [vmem:[%s5] sm:$0x3]
    %v57 = vlaneseq
    %v58 = vshrl.u32 %v57, 7
    %v59 = vsub.s32 0, %v58
    %v60 = vrot.slane %v55, %v59
    %v61 = vlaneseq
    %v62 = vshrl.u32 %v61, 7
    %v63 = vsub.s32 1, %v62
    %v64 = vrot.slane %v55, %v63
    %v68 = vunpack.c.l.b16 %v54
    %v69 = vunpack.c.h.b16 %v54
    %v70 = vpack.c.b16 %v68, %v68
    %v71 = vpack.c.b16 %v69, %v69
    %vm72 = vcmask 64512
    %v74 = vsel %vm72, %v51, 0
    %vm76 = vcmask 1043456
    %v78 = vsel %vm76, %v70, 0
    %v81 = vsel %vm76, %v71, 0
    %83 = vmatprep.subr.bf16.mxu0 %v81
    %84 = vmatpush1.bf16.msra.mxu0 %v78
    %85 = vmatprep.subr.bf16.mxu0 0
    %86 = vmatpush1.bf16.msra.mxu0 0
    %87 = vmatprep.subr.bf16.mxu0 0
    %88 = vmatpush1.bf16.msra.mxu0 0
    %89 = vmatprep.subr.bf16.mxu0 0
    %90 = vmatpush1.bf16.msra.mxu0 0
    %91 = vmatprep.subr.bf16.mxu0 0
    %92 = vmatpush1.bf16.msra.mxu0 0
    %93 = vmatprep.subr.bf16.mxu0 0
    %94 = vmatpush1.bf16.msra.mxu0 0
    %95 = vmatprep.subr.bf16.mxu0 0
    %96 = vmatpush1.bf16.msra.mxu0 0
    %97 = vmatprep.subr.bf16.mxu0 0
    %98 = vmatpush1.bf16.msra.mxu0 0
    %99 = vmatprep.subr.bf16.mxu0 0
    %100 = vmatpush1.bf16.msra.mxu0 0
    %101 = vmatprep.subr.bf16.mxu0 0
    %102 = vmatpush1.bf16.msra.mxu0 0
    %103 = vmatprep.subr.bf16.mxu0 0
    %104 = vmatpush1.bf16.msra.mxu0 0
    %105 = vmatprep.subr.bf16.mxu0 0
    %106 = vmatpush1.bf16.msra.mxu0 0
    %107 = vmatprep.subr.bf16.mxu0 0
    %108 = vmatpush1.bf16.msra.mxu0 0
    %109 = vmatprep.subr.bf16.mxu0 0
    %110 = vmatpush1.bf16.msra.mxu0 0
    %111 = vmatprep.subr.bf16.mxu0 0
    %112 = vmatpush1.bf16.msra.mxu0 0
    %113 = vmatprep.subr.bf16.mxu0 0
    %114 = vmatpush1.bf16.msra.mxu0 0
    %115 = vmatprep.mubr.bf16.mxu0 0
    %116 = vmatmul.mubr.bf16.gmra.mrb[0].mxu0 %v74
    %v117 = vpop.f32.mrb[0].mxu0
    %v118 = vadd.f32 %v60, %v117
    %v119 = vpop.f32.mrb[0].mxu0
    %v120 = vadd.f32 %v64, %v119
    %v121 = vpop.f32.mrb[0].mxu0
    %v122 = vpop.f32.mrb[0].mxu0
    %123 = vdwg.mxu0
    %v124 = vmax.f32 %v118, 0.0
    %v125 = vmax.f32 %v120, 0.0
    %v126 = vpack.c.bf16 %v124, %v124
    %v127 = vpack.c.bf16 %v125, %v125
    %v128 = vld [vmem:[#allocation2] sm:$0xf]
    %v129 = vld [vmem:[#allocation2 + $0x4] sm:$0xf]
    %v130 = vld [vmem:[#allocation2 + $0x8] sm:$0xf]
    %v131 = vld [vmem:[#allocation2 + $0xc] sm:$0xf]
    %v132 = vld [vmem:[#allocation2 + $0x10] sm:$0xf]
    %v133 = vld [vmem:[#allocation2 + $0x14] sm:$0xf]
    %v134 = vld [vmem:[#allocation2 + $0x18] sm:$0xf]
    %v135 = vld [vmem:[#allocation2 + $0x1c] sm:$0xf]
    %v136 = vld [vmem:[#allocation2 + $0x20] sm:$0xf]
    %v137 = vld [vmem:[#allocation2 + $0x24] sm:$0xf]
    %v138 = vld [vmem:[#allocation2 + $0x28] sm:$0xf]
    %v139 = vld [vmem:[#allocation2 + $0x2c] sm:$0xf]
    %v140 = vld [vmem:[#allocation2 + $0x30] sm:$0xf]
    %v141 = vld [vmem:[#allocation2 + $0x34] sm:$0xf]
    %v142 = vld [vmem:[#allocation2 + $0x38] sm:$0xf]
    %v143 = vld [vmem:[#allocation2 + $0x3c] sm:$0xf]
    %v144 = vld [vmem:[#allocation2 + $0x40] sm:$0xf]
    %v145 = vld [vmem:[#allocation2 + $0x44] sm:$0xf]
    %v146 = vld [vmem:[#allocation2 + $0x48] sm:$0xf]
    %v147 = vld [vmem:[#allocation2 + $0x4c] sm:$0xf]
    %v148 = vld [vmem:[#allocation2 + $0x50] sm:$0xf]
    %v149 = vld [vmem:[#allocation2 + $0x54] sm:$0xf]
    %v150 = vld [vmem:[#allocation2 + $0x58] sm:$0xf]
    %v151 = vld [vmem:[#allocation2 + $0x5c] sm:$0xf]
    %v152 = vld [vmem:[#allocation2 + $0x60] sm:$0xf]
    %v153 = vld [vmem:[#allocation2 + $0x64] sm:$0xf]
    %v154 = vld [vmem:[#allocation2 + $0x68] sm:$0xf]
    %v155 = vld [vmem:[#allocation2 + $0x6c] sm:$0xf]
    %v156 = vld [vmem:[#allocation2 + $0x70] sm:$0xf]
    %v157 = vld [vmem:[#allocation2 + $0x74] sm:$0xf]
    %v158 = vld [vmem:[#allocation2 + $0x78] sm:$0xf]
    %v159 = vld [vmem:[#allocation2 + $0x7c] sm:$0xf]
    %v160 = vld [vmem:[%s7] sm:$0x1]
    %v162 = vlaneseq
    %v163 = vshrl.u32 %v162, 7
    %v164 = vsub.s32 0, %v163
    %v165 = vrot.slane %v160, %v164
    %v199 = vunpack.c.l.b16 %v128
    %v200 = vunpack.c.l.b16 %v129
    %v201 = vunpack.c.l.b16 %v130
    %v202 = vunpack.c.l.b16 %v131
    %v203 = vunpack.c.l.b16 %v132
    %v204 = vunpack.c.l.b16 %v133
    %v205 = vunpack.c.l.b16 %v134
    %v206 = vunpack.c.l.b16 %v135
    %v207 = vunpack.c.l.b16 %v136
    %v208 = vunpack.c.l.b16 %v137
    %v209 = vunpack.c.l.b16 %v138
    %v210 = vunpack.c.l.b16 %v139
    %v211 = vunpack.c.l.b16 %v140
    %v212 = vunpack.c.l.b16 %v141
    %v213 = vunpack.c.l.b16 %v142
    %v214 = vunpack.c.l.b16 %v143
    %v215 = vunpack.c.l.b16 %v144
    %v216 = vunpack.c.l.b16 %v145
    %v217 = vunpack.c.l.b16 %v146
    %v218 = vunpack.c.l.b16 %v147
    %v219 = vunpack.c.l.b16 %v148
    %v220 = vunpack.c.l.b16 %v149
    %v221 = vunpack.c.l.b16 %v150
    %v222 = vunpack.c.l.b16 %v151
    %v223 = vunpack.c.l.b16 %v152
    %v224 = vunpack.c.l.b16 %v153
    %v225 = vunpack.c.l.b16 %v154
    %v226 = vunpack.c.l.b16 %v155
    %v227 = vunpack.c.l.b16 %v156
    %v228 = vunpack.c.l.b16 %v157
    %v229 = vunpack.c.l.b16 %v158
    %v230 = vunpack.c.l.b16 %v159
    %v231 = vpack.c.b16 %v200, %v199
    %v232 = vpack.c.b16 %v202, %v201
    %v233 = vpack.c.b16 %v204, %v203
    %v234 = vpack.c.b16 %v206, %v205
    %v235 = vpack.c.b16 %v208, %v207
    %v236 = vpack.c.b16 %v210, %v209
    %v237 = vpack.c.b16 %v212, %v211
    %v238 = vpack.c.b16 %v214, %v213
    %v239 = vpack.c.b16 %v216, %v215
    %v240 = vpack.c.b16 %v218, %v217
    %v241 = vpack.c.b16 %v220, %v219
    %v242 = vpack.c.b16 %v222, %v221
    %v243 = vpack.c.b16 %v224, %v223
    %v244 = vpack.c.b16 %v226, %v225
    %v245 = vpack.c.b16 %v228, %v227
    %v246 = vpack.c.b16 %v230, %v229
    %263 = vmatprep.subr.bf16.mxu0 0
    %264 = vmatpush1.bf16.msra.mxu0 %v231
    %265 = vmatprep.subr.bf16.mxu0 0
    %266 = vmatpush1.bf16.msra.mxu0 %v232
    %267 = vmatprep.subr.bf16.mxu0 0
    %268 = vmatpush1.bf16.msra.mxu0 %v233
    %269 = vmatprep.subr.bf16.mxu0 0
    %270 = vmatpush1.bf16.msra.mxu0 %v234
    %271 = vmatprep.subr.bf16.mxu0 0
    %272 = vmatpush1.bf16.msra.mxu0 %v235
    %273 = vmatprep.subr.bf16.mxu0 0
    %274 = vmatpush1.bf16.msra.mxu0 %v236
    %275 = vmatprep.subr.bf16.mxu0 0
    %276 = vmatpush1.bf16.msra.mxu0 %v237
    %277 = vmatprep.subr.bf16.mxu0 0
    %278 = vmatpush1.bf16.msra.mxu0 %v238
    %279 = vmatprep.subr.bf16.mxu0 0
    %280 = vmatpush1.bf16.msra.mxu0 %v239
    %281 = vmatprep.subr.bf16.mxu0 0
    %282 = vmatpush1.bf16.msra.mxu0 %v240
    %283 = vmatprep.subr.bf16.mxu0 0
    %284 = vmatpush1.bf16.msra.mxu0 %v241
    %285 = vmatprep.subr.bf16.mxu0 0
    %286 = vmatpush1.bf16.msra.mxu0 %v242
    %287 = vmatprep.subr.bf16.mxu0 0
    %288 = vmatpush1.bf16.msra.mxu0 %v243
    %289 = vmatprep.subr.bf16.mxu0 0
    %290 = vmatpush1.bf16.msra.mxu0 %v244
    %291 = vmatprep.subr.bf16.mxu0 0
    %292 = vmatpush1.bf16.msra.mxu0 %v245
    %293 = vmatprep.subr.bf16.mxu0 0
    %294 = vmatpush1.bf16.msra.mxu0 %v246
    %295 = vmatprep.mubr.bf16.mxu0 %v127
    %296 = vmatmul.mubr.bf16.gmra.mrb[0].mxu0 %v126
    %v297 = vpop.f32.mrb[0].mxu0
    %v298 = vadd.f32 %v165, %v297
    %v299 = vpop.f32.mrb[0].mxu0
    %v300 = vpop.f32.mrb[0].mxu0
    %v301 = vpop.f32.mrb[0].mxu0
    %302 = vdwg.mxu0
    %v303 = vmax.f32 %v298, 0.0
    %v304 = vpack.c.bf16 %v303, %v303
    %v305 = vld [vmem:[%s8] sm:$0xf]
    %v306 = vld [vmem:[%s8 + $0x4] sm:$0xf]
    %v307 = vld [vmem:[%s8 + $0x8] sm:$0xf]
    %v308 = vld [vmem:[%s8 + $0xc] sm:$0xf]
    %v309 = vld [vmem:[%s8 + $0x10] sm:$0xf]
    %v310 = vld [vmem:[%s8 + $0x14] sm:$0xf]
    %v311 = vld [vmem:[%s8 + $0x18] sm:$0xf]
    %v312 = vld [vmem:[%s8 + $0x1c] sm:$0xf]
    %v313 = vld [vmem:[%s8 + $0x20] sm:$0xf]
    %v314 = vld [vmem:[%s8 + $0x24] sm:$0xf]
    %v315 = vld [vmem:[%s8 + $0x28] sm:$0xf]
    %v316 = vld [vmem:[%s8 + $0x2c] sm:$0xf]
    %v317 = vld [vmem:[%s8 + $0x30] sm:$0xf]
    %v318 = vld [vmem:[%s8 + $0x34] sm:$0xf]
    %v319 = vld [vmem:[%s8 + $0x38] sm:$0xf]
    %v320 = vld [vmem:[%s8 + $0x3c] sm:$0xf]
    %v321 = vld [vmem:[%s9] sm:$0x1]
    %v323 = vlaneseq
    %v324 = vshrl.u32 %v323, 7
    %v325 = vsub.s32 0, %v324
    %v326 = vrot.slane %v321, %v325
    %v344 = vunpack.c.l.b16 %v305
    %v345 = vunpack.c.l.b16 %v306
    %v346 = vunpack.c.l.b16 %v307
    %v347 = vunpack.c.l.b16 %v308
    %v348 = vunpack.c.l.b16 %v309
    %v349 = vunpack.c.l.b16 %v310
    %v350 = vunpack.c.l.b16 %v311
    %v351 = vunpack.c.l.b16 %v312
    %v352 = vunpack.c.l.b16 %v313
    %v353 = vunpack.c.l.b16 %v314
    %v354 = vunpack.c.l.b16 %v315
    %v355 = vunpack.c.l.b16 %v316
    %v356 = vunpack.c.l.b16 %v317
    %v357 = vunpack.c.l.b16 %v318
    %v358 = vunpack.c.l.b16 %v319
    %v359 = vunpack.c.l.b16 %v320
    %v360 = vpack.c.b16 %v345, %v344
    %v361 = vpack.c.b16 %v347, %v346
    %v362 = vpack.c.b16 %v349, %v348
    %v363 = vpack.c.b16 %v351, %v350
    %v364 = vpack.c.b16 %v353, %v352
    %v365 = vpack.c.b16 %v355, %v354
    %v366 = vpack.c.b16 %v357, %v356
    %v367 = vpack.c.b16 %v359, %v358
    %376 = vmatprep.subr.bf16.mxu0 0
    %377 = vmatpush1.bf16.msra.mxu0 %v360
    %378 = vmatprep.subr.bf16.mxu0 0
    %379 = vmatpush1.bf16.msra.mxu0 %v361
    %380 = vmatprep.subr.bf16.mxu0 0
    %381 = vmatpush1.bf16.msra.mxu0 %v362
    %382 = vmatprep.subr.bf16.mxu0 0
    %383 = vmatpush1.bf16.msra.mxu0 %v363
    %384 = vmatprep.subr.bf16.mxu0 0
    %385 = vmatpush1.bf16.msra.mxu0 %v364
    %386 = vmatprep.subr.bf16.mxu0 0
    %387 = vmatpush1.bf16.msra.mxu0 %v365
    %388 = vmatprep.subr.bf16.mxu0 0
    %389 = vmatpush1.bf16.msra.mxu0 %v366
    %390 = vmatprep.subr.bf16.mxu0 0
    %391 = vmatpush1.bf16.msra.mxu0 %v367
    %392 = vmatprep.subr.bf16.mxu0 0
    %393 = vmatpush1.bf16.msra.mxu0 0
    %394 = vmatprep.subr.bf16.mxu0 0
    %395 = vmatpush1.bf16.msra.mxu0 0
    %396 = vmatprep.subr.bf16.mxu0 0
    %397 = vmatpush1.bf16.msra.mxu0 0
    %398 = vmatprep.subr.bf16.mxu0 0
    %399 = vmatpush1.bf16.msra.mxu0 0
    %400 = vmatprep.subr.bf16.mxu0 0
    %401 = vmatpush1.bf16.msra.mxu0 0
    %402 = vmatprep.subr.bf16.mxu0 0
    %403 = vmatpush1.bf16.msra.mxu0 0
    %404 = vmatprep.subr.bf16.mxu0 0
    %405 = vmatpush1.bf16.msra.mxu0 0
    %406 = vmatprep.subr.bf16.mxu0 0
    %407 = vmatpush1.bf16.msra.mxu0 0
    %408 = vmatprep.mubr.bf16.mxu0 0
    %409 = vmatmul.mubr.bf16.gmra.mrb[0].mxu0 %v304
    %v410 = vpop.f32.mrb[0].mxu0
    %v411 = vadd.f32 %v326, %v410
    %v412 = vpop.f32.mrb[0].mxu0
    %v413 = vpop.f32.mrb[0].mxu0
    %v414 = vpop.f32.mrb[0].mxu0
    %415 = vdwg.mxu0
    %v416 = vtanh.pop %v411
    %v417 = vsub.f32 %v52, %v416
    %v418 = vmul.f32 %v417, %v417
    %v420 = vlaneseq
    %v421 = vshrl.u32 %v420, 7
    %v422 = vsub.s32 0, %v421
    %v423 = vrot.slane %v53, %v422
    %v425 = vmul.f32 %v418, %v423
    %vm426 = vcmask 31744
    %v427 = vsel %vm426, %v425, 0.0
    %428 = vadd.xlane.f32.xlu0 %v427
    %v429 = vpop.xlane.xlu0 %428
    %v430 = vld [vmem:[%s3] sm:$0x1]
    %v431 = vmul.f32 %v429, 0.5
    %v433 = vlaneseq
    %v434 = vshrl.u32 %v433, 7
    %v435 = vsub.s32 0, %v434
    %v436 = vrot.slane %v430, %v435
    %v438 = vsub.f32 %v436, %v431
    %v439 = vlaneseq
    %v440 = vand.u32 %v439, 127
    %vm441 = vcmp.eq.s32.totalorder %v440, 0
    %vm442 = vcmp.eq.s32.totalorder %v440, 1
    %444 = vset.pattern.permute.xlu0 4
    %445 = vperm.xlu0 %444, %v411
    %v446 = vpop.permute.xlu0 %445
    %448 = vset.pattern.permute.xlu0 1
    %449 = vperm.xlu0 %448, %v436
    %v450 = vpop.permute.xlu0 %449
    %v452 = vsel %vm442, %v446, %v450
    %454 = vset.pattern.permute.xlu0 0
    %455 = vperm.xlu0 %454, %v438
    %v456 = vpop.permute.xlu0 %455
    %v458 = vsel %vm441, %v456, %v452
    %459 = vst.msk [vmem:[#allocation5] sm:$0xff] %vm72, %v458
    // Predicated region
    $region46: #{tpu_custom_call.1} parent=1 // pred_check
      _
    $region47: #{tpu_custom_call.1} parent=1 // pred_check_branch
      %461 = sbr.rel (0) target = $region49
    $region48: #{tpu_custom_call.1} parent=1 // pred_region
      %s463 = ssub.s32 128, 128
      %464 = vsyncadd [#allocation4], %s463
      %s466 = sshll.u32 [#allocation5], 4
      %s467 = int_to_ptr.vmem [resolvable:$true] %s466
      %469 = dma.vmem_to_hbm [thread:$0]  %s467, 128, %s10, [#allocation4]
    $region49: #{tpu_custom_call.1} parent=1 // pred_fallthru
      _
    // Predicated region
    $region50: #{tpu_custom_call.1} parent=1 // pred_check
      _
    $region51: #{tpu_custom_call.1} parent=1 // pred_check_branch
      %471 = sbr.rel (0) target = $region53
    $region52: #{tpu_custom_call.1} parent=1 // pred_region
      %472 = dma.done [#allocation4], 128
    $region53: #{tpu_custom_call.1} parent=1 // pred_fallthru
      _
    %473 = vsyncpa [#allocation3], 1
    %474 = vsyncpa [#allocation4], 1

</llo_original>
